<compile_context>
chip_gen: v6e
topology: v6e:2x2x1
jax: 0.10.0
libtpu: 0.0.40
codegen_flags: <defaults>
</compile_context>

<pallas_src>
import jax
import jax.numpy as jnp
from jax.experimental import pallas as pl
from jax.experimental.pallas import tpu as pltpu


VMEM_LIMIT_BYTES = 40 * 1024 * 1024   # headroom vs 64 MiB (v7x) / 128 MiB (v5e/v6e)


# --------------------------------------------------------------------------- #
# Kernel 1: LayerNorm + first feature transform   T1 = LN(x) @ W1
# --------------------------------------------------------------------------- #
def _ln_transform_kernel(x_ref, ln_g_ref, ln_b_ref, w1_ref, t1_ref):
    f32 = jnp.float32
    x = x_ref[...].astype(f32)
    mean = jnp.mean(x, axis=-1, keepdims=True)
    centered = x - mean
    var = jnp.mean(centered * centered, axis=-1, keepdims=True)
    h = centered * jax.lax.rsqrt(var + 1e-5)
    h = h * ln_g_ref[...] + ln_b_ref[...]                  # f32 affine
    t1_ref[...] = jnp.dot(h.astype(jnp.bfloat16), w1_ref[...],
                          preferred_element_type=f32).astype(t1_ref.dtype)


# --------------------------------------------------------------------------- #
# Kernel 2: graph aggregation + next feature transform
#           T2 = ReLU(A_hat @ T1 + b1) @ W2
# Grid = (row_tiles, col_tiles); columns (contraction) last, accumulated.
# --------------------------------------------------------------------------- #
def _aggregate_transform_kernel(adj_ref, h_ref, b_ref, w_ref, out_ref, acc_ref):
    k = pl.program_id(1)
    tile_c = adj_ref.shape[1]

    @pl.when(k == 0)
    def _():
        acc_ref[...] = jnp.zeros_like(acc_ref)

    col0 = pl.multiple_of(k * tile_c, tile_c)
    acc_ref[...] += jnp.dot(adj_ref[...], h_ref[pl.ds(col0, tile_c), :],
                            preferred_element_type=jnp.float32)

    @pl.when(k == pl.num_programs(1) - 1)
    def _():
        act = jnp.maximum(acc_ref[...] + b_ref[...], 0.0)
        out_ref[...] = jnp.dot(act.astype(jnp.bfloat16), w_ref[...],
                               preferred_element_type=jnp.float32
                               ).astype(out_ref.dtype)


# --------------------------------------------------------------------------- #
# Kernel 3: graph aggregation + MLP head + sigmoid (lane-dense padded output)
#           Y = sigmoid(ReLU(ReLU(A_hat @ T2 + b2) @ Wh1 + bh1) @ Wh2 + bh2)
# --------------------------------------------------------------------------- #
def _aggregate_head_kernel(adj_ref, h_ref, b2_ref, wh1_ref, bh1_ref,
                           wh2_ref, bh2_ref, out_ref, acc_ref):
    k = pl.program_id(1)
    tile_c = adj_ref.shape[1]

    @pl.when(k == 0)
    def _():
        acc_ref[...] = jnp.zeros_like(acc_ref)

    col0 = pl.multiple_of(k * tile_c, tile_c)
    acc_ref[...] += jnp.dot(adj_ref[...], h_ref[pl.ds(col0, tile_c), :],
                            preferred_element_type=jnp.float32)

    @pl.when(k == pl.num_programs(1) - 1)
    def _():
        f32 = jnp.float32
        h2 = jnp.maximum(acc_ref[...] + b2_ref[...], 0.0)
        z = jnp.dot(h2.astype(jnp.bfloat16), wh1_ref[...],
                    preferred_element_type=f32) + bh1_ref[...]
        z = jnp.maximum(z, 0.0)
        y = jnp.dot(z.astype(jnp.bfloat16), wh2_ref[...],
                    preferred_element_type=f32) + bh2_ref[...]
        out_ref[...] = jax.nn.sigmoid(y).astype(out_ref.dtype)


# --------------------------------------------------------------------------- #
# Wrapper
# --------------------------------------------------------------------------- #
def full_graph_network(x, adj_hat, params, *, tile_r=128, tile_c=128):
    """x: [N, D_in] bf16 node features, adj_hat: [N, N] bf16 normalized adjacency."""
    n, d_in = x.shape
    d_hid = params["w1"].shape[1]
    d_head = params["wh1"].shape[1]
    d_out_pad = params["wh2"].shape[1]          # lane-dense (multiple of 128)
    d_out = params["d_out"]
    assert n % tile_r == 0 and n % tile_c == 0

    rows, cols = n // tile_r, n // tile_c

    cp_rows = pltpu.CompilerParams(
        dimension_semantics=("parallel",),
        vmem_limit_bytes=VMEM_LIMIT_BYTES)
    cp_rows_cols = pltpu.CompilerParams(
        dimension_semantics=("parallel", "arbitrary"),
        vmem_limit_bytes=VMEM_LIMIT_BYTES)

    const1 = lambda shape: pl.BlockSpec(shape, lambda i: (0, 0))
    const2 = lambda shape: pl.BlockSpec(shape, lambda i, k: (0, 0))

    # ---- Stage 1: LayerNorm + h @ W1 (row-tiled, fully parallel) ------------
    t1 = pl.pallas_call(
        _ln_transform_kernel,
        out_shape=jax.ShapeDtypeStruct((n, d_hid), jnp.bfloat16),
        grid=(rows,),
        in_specs=[
            pl.BlockSpec((tile_r, d_in), lambda i: (i, 0)),
            const1((1, d_in)),
            const1((1, d_in)),
            const1((d_in, d_hid)),
        ],
        out_specs=pl.BlockSpec((tile_r, d_hid), lambda i: (i, 0)),
        compiler_params=cp_rows,
    )(x, params["ln_g"], params["ln_b"], params["w1"])

    # ---- Stage 2: GNN layer 1 aggregate + layer 2 feature transform ---------
    t2 = pl.pallas_call(
        _aggregate_transform_kernel,
        out_shape=jax.ShapeDtypeStruct((n, d_hid), jnp.bfloat16),
        grid=(rows, cols),
        in_specs=[
            pl.BlockSpec((tile_r, tile_c), lambda i, k: (i, k)),   # adjacency streamed
            const2((n, d_hid)),                                    # T1 resident
            const2((1, d_hid)),                                    # b1
            const2((d_hid, d_hid)),                                # W2
        ],
        out_specs=pl.BlockSpec((tile_r, d_hid), lambda i, k: (i, 0)),
        scratch_shapes=[pltpu.VMEM((tile_r, d_hid), jnp.float32)],
        compiler_params=cp_rows_cols,
    )(adj_hat, t1, params["b1"], params["w2"])

    # ---- Stage 3: GNN layer 2 aggregate + head MLP + sigmoid ----------------
    out_pad = pl.pallas_call(
        _aggregate_head_kernel,
        out_shape=jax.ShapeDtypeStruct((n, d_out_pad), jnp.float32),
        grid=(rows, cols),
        in_specs=[
            pl.BlockSpec((tile_r, tile_c), lambda i, k: (i, k)),   # adjacency streamed
            const2((n, d_hid)),                                    # T2 resident
            const2((1, d_hid)),                                    # b2
            const2((d_hid, d_head)),                               # Wh1
            const2((1, d_head)),                                   # bh1
            const2((d_head, d_out_pad)),                           # Wh2 (padded)
            const2((1, d_out_pad)),                                # bh2 (padded)
        ],
        out_specs=pl.BlockSpec((tile_r, d_out_pad), lambda i, k: (i, 0)),
        scratch_shapes=[pltpu.VMEM((tile_r, d_hid), jnp.float32)],
        compiler_params=cp_rows_cols,
    )(adj_hat, t2, params["b2"], params["wh1"], params["bh1"],
      params["wh2"], params["bh2"])

    return out_pad[:, :d_out]


# --------------------------------------------------------------------------- #
# Parameters / reference
# --------------------------------------------------------------------------- #
def make_params(key, d_in, d_hid, d_head, d_out, d_out_pad=128):
    ks = jax.random.split(key, 8)

    def lin(k, fan_in, fan_out):
        scale = 1.0 / jnp.sqrt(jnp.float32(fan_in))
        w = jax.random.uniform(k, (fan_in, fan_out), jnp.float32, -scale, scale)
        return w.astype(jnp.bfloat16)           # bf16 MXU operands

    wh2 = lin(ks[3], d_head, d_out)
    wh2_pad = jnp.zeros((d_head, d_out_pad), jnp.bfloat16).at[:, :d_out].set(wh2)
    bh2 = 0.01 * jax.random.normal(ks[7], (1, d_out), jnp.float32)
    bh2_pad = jnp.zeros((1, d_out_pad), jnp.float32).at[:, :d_out].set(bh2)

    return {
        "ln_g": jnp.ones((1, d_in), jnp.float32),
        "ln_b": jnp.zeros((1, d_in), jnp.float32),
        "w1": lin(ks[0], d_in, d_hid),
        "b1": 0.1 * jax.random.normal(ks[4], (1, d_hid), jnp.float32),
        "w2": lin(ks[1], d_hid, d_hid),
        "b2": 0.1 * jax.random.normal(ks[5], (1, d_hid), jnp.float32),
        "wh1": lin(ks[2], d_hid, d_head),
        "bh1": 0.1 * jax.random.normal(ks[6], (1, d_head), jnp.float32),
        "wh2": wh2_pad,
        "bh2": bh2_pad,
        "d_out": d_out,
    }


def reference_forward(x, adj_hat, params):
    """Plain-JAX f32 reference (same bf16-rounded weights, f32 everywhere else)."""
    f32 = jnp.float32
    xf = x.astype(f32)
    a = adj_hat.astype(f32)
    mean = jnp.mean(xf, axis=-1, keepdims=True)
    c = xf - mean
    var = jnp.mean(c * c, axis=-1, keepdims=True)
    h = c * jax.lax.rsqrt(var + 1e-5) * params["ln_g"] + params["ln_b"]
    h = jnp.maximum(a @ (h @ params["w1"].astype(f32)) + params["b1"], 0.0)
    h = jnp.maximum(a @ (h @ params["w2"].astype(f32)) + params["b2"], 0.0)
    h = jnp.maximum(h @ params["wh1"].astype(f32) + params["bh1"], 0.0)
    h = h @ params["wh2"].astype(f32) + params["bh2"]
    return jax.nn.sigmoid(h)[:, : params["d_out"]]


# --------------------------------------------------------------------------- #
# Demo
# --------------------------------------------------------------------------- #
if __name__ == "__main__":
    key = jax.random.PRNGKey(0)
    k_x, k_adj, k_p = jax.random.split(key, 3)

    # Small but TPU-aligned shapes (feature dims multiples of 128, node axis
    # divisible by the 128-row/col tiles).
    N = 256        # nodes
    D_IN = 128     # input_dim
    D_HID = 128    # gnn output_dim
    D_HEAD = 128   # head hidden_dim
    D_OUT = 8      # head output_dim (padded to 128 lanes inside the kernel)

    x = jax.random.normal(k_x, (N, D_IN), jnp.float32).astype(jnp.bfloat16)

    # Deterministic random graph -> symmetric adjacency with self loops,
    # symmetric normalization A_hat = D^-1/2 (A + I) D^-1/2  (plain-JAX glue).
    a = (jax.random.uniform(k_adj, (N, N)) > 0.9).astype(jnp.float32)
    a = jnp.maximum(a, a.T)
    a = a + jnp.eye(N, dtype=jnp.float32)
    deg_inv_sqrt = 1.0 / jnp.sqrt(jnp.sum(a, axis=-1))
    adj_hat = (a * deg_inv_sqrt[:, None] * deg_inv_sqrt[None, :]).astype(jnp.bfloat16)

    params = make_params(k_p, D_IN, D_HID, D_HEAD, D_OUT)

    out = full_graph_network(x, adj_hat, params)
    jax.block_until_ready(out)

    ref = reference_forward(x, adj_hat, params)

    assert out.shape == (N, D_OUT)
    assert bool(jnp.all(jnp.isfinite(out)))
    assert bool(jnp.all((out >= 0.0) & (out <= 1.0)))        # sigmoid range
    assert bool(jnp.allclose(out, ref, atol=2e-2, rtol=2e-2))  # bf16-vs-f32 tolerance
    print("KERNEL_OK")
</pallas_src>

<mosaic_0001>
module attributes {stable_mosaic.version = 11 : i64} {
  func.func @_ln_transform_kernel(%arg0: i32, %arg1: memref<128x128xbf16, #tpu.memory_space<vmem>>, %arg2: memref<1x128xf32, #tpu.memory_space<vmem>>, %arg3: memref<1x128xf32, #tpu.memory_space<vmem>>, %arg4: memref<128x128xbf16, #tpu.memory_space<vmem>>, %arg5: memref<128x128xbf16, #tpu.memory_space<vmem>>) attributes {dimension_semantics = [#tpu.dimension_semantics<parallel>], iteration_bounds = array<i64: 2>, scalar_prefetch = 0 : i64, scratch_operands = 0 : i64, tpu.core_type = #tpu.core_type<tc>, window_params = [{transform_indices = @transform_0, window_bounds = array<i64: 128, 128>}, {pipeline_mode = #tpu.pipeline_mode<synchronous>, transform_indices = @transform_1, window_bounds = array<i64: 1, 128>}, {pipeline_mode = #tpu.pipeline_mode<synchronous>, transform_indices = @transform_2, window_bounds = array<i64: 1, 128>}, {pipeline_mode = #tpu.pipeline_mode<synchronous>, transform_indices = @transform_3, window_bounds = array<i64: 128, 128>}, {transform_indices = @transform_4, window_bounds = array<i64: 128, 128>}]} {
    %c0 = arith.constant 0 : index
    %c0_0 = arith.constant 0 : index
    %0 = vector.load %arg1[%c0, %c0_0] : memref<128x128xbf16, #tpu.memory_space<vmem>>, vector<128x128xbf16>
    %1 = arith.extf %0 : vector<128x128xbf16> to vector<128x128xf32>
    %cst = arith.constant dense<0.000000e+00> : vector<128xf32>
    %2 = vector.multi_reduction <add>, %1, %cst [1] : vector<128x128xf32> to vector<128xf32>
    %3 = vector.shape_cast %2 : vector<128xf32> to vector<128x1xf32>
    %cst_1 = arith.constant 1.280000e+02 : f32
    %4 = vector.broadcast %cst_1 : f32 to vector<128x1xf32>
    %5 = arith.divf %3, %4 : vector<128x1xf32>
    %6 = vector.broadcast %5 : vector<128x1xf32> to vector<128x128xf32>
    %7 = arith.subf %1, %6 : vector<128x128xf32>
    %8 = arith.mulf %7, %7 : vector<128x128xf32>
    %cst_2 = arith.constant dense<0.000000e+00> : vector<128xf32>
    %9 = vector.multi_reduction <add>, %8, %cst_2 [1] : vector<128x128xf32> to vector<128xf32>
    %10 = vector.shape_cast %9 : vector<128xf32> to vector<128x1xf32>
    %cst_3 = arith.constant 1.280000e+02 : f32
    %11 = vector.broadcast %cst_3 : f32 to vector<128x1xf32>
    %12 = arith.divf %10, %11 : vector<128x1xf32>
    %cst_4 = arith.constant 9.99999974E-6 : f32
    %13 = vector.broadcast %cst_4 : f32 to vector<128x1xf32>
    %14 = arith.addf %12, %13 : vector<128x1xf32>
    %15 = math.rsqrt %14 : vector<128x1xf32>
    %16 = vector.broadcast %15 : vector<128x1xf32> to vector<128x128xf32>
    %17 = arith.mulf %7, %16 : vector<128x128xf32>
    %c0_5 = arith.constant 0 : index
    %c0_6 = arith.constant 0 : index
    %18 = vector.load %arg2[%c0_5, %c0_6] : memref<1x128xf32, #tpu.memory_space<vmem>>, vector<1x128xf32>
    %19 = vector.broadcast %18 : vector<1x128xf32> to vector<128x128xf32>
    %20 = arith.mulf %17, %19 : vector<128x128xf32>
    %c0_7 = arith.constant 0 : index
    %c0_8 = arith.constant 0 : index
    %21 = vector.load %arg3[%c0_7, %c0_8] : memref<1x128xf32, #tpu.memory_space<vmem>>, vector<1x128xf32>
    %22 = vector.broadcast %21 : vector<1x128xf32> to vector<128x128xf32>
    %23 = arith.addf %20, %22 : vector<128x128xf32>
    %24 = arith.truncf %23 : vector<128x128xf32> to vector<128x128xbf16>
    %c0_9 = arith.constant 0 : index
    %c0_10 = arith.constant 0 : index
    %25 = vector.load %arg4[%c0_9, %c0_10] : memref<128x128xbf16, #tpu.memory_space<vmem>>, vector<128x128xbf16>
    %cst_11 = arith.constant dense<0.000000e+00> : vector<128x128xf32>
    %26 = tpu.matmul %24, %25, %cst_11 {dimension_numbers = #tpu.dot_dimension_numbers<[1], [0], [0], [1], [0, 0, 1, 1], [], []>} : vector<128x128xbf16>, vector<128x128xbf16>, vector<128x128xf32> -> vector<128x128xf32>
    %27 = arith.truncf %26 : vector<128x128xf32> to vector<128x128xbf16>
    %c0_12 = arith.constant 0 : index
    %c0_13 = arith.constant 0 : index
    %28 = vector.load %arg5[%c0_12, %c0_13] : memref<128x128xbf16, #tpu.memory_space<vmem>>, vector<128x128xbf16>
    tpu.vector_store %arg5[%c0_12, %c0_13], %27 {strides = array<i32>} : memref<128x128xbf16, #tpu.memory_space<vmem>>, vector<128x128xbf16>,
    return
  }
  func.func @transform_0(%arg0: i32) -> (i32, i32) {
    %c0_i32 = arith.constant 0 : i32
    %c0_i32_0 = arith.constant 0 : i32
    return %arg0, %c0_i32 : i32, i32
  }
  func.func @transform_1(%arg0: i32) -> (i32, i32) {
    %c0_i32 = arith.constant 0 : i32
    %c0_i32_0 = arith.constant 0 : i32
    %c0_i32_1 = arith.constant 0 : i32
    return %c0_i32, %c0_i32_0 : i32, i32
  }
  func.func @transform_2(%arg0: i32) -> (i32, i32) {
    %c0_i32 = arith.constant 0 : i32
    %c0_i32_0 = arith.constant 0 : i32
    %c0_i32_1 = arith.constant 0 : i32
    return %c0_i32, %c0_i32_0 : i32, i32
  }
  func.func @transform_3(%arg0: i32) -> (i32, i32) {
    %c0_i32 = arith.constant 0 : i32
    %c0_i32_0 = arith.constant 0 : i32
    %c0_i32_1 = arith.constant 0 : i32
    return %c0_i32, %c0_i32_0 : i32, i32
  }
  func.func @transform_4(%arg0: i32) -> (i32, i32) {
    %c0_i32 = arith.constant 0 : i32
    %c0_i32_0 = arith.constant 0 : i32
    return %arg0, %c0_i32 : i32, i32
  }
}

</mosaic_0001>

<llo_original>
// kernel: tpu_custom_call.1
$region0: #{tpu_custom_call.1}
  #allocation0 [shape = 'u32[]', space=smem, size = 0x4, offset = 0x4, fixed_abs, tag = 'smem constant byte address 0x4 - core index']
  #allocation1 [shape = 'u32[144,128]{1,0:T(1,128)}', space=vmem, size = 0x12000, scoped, tag = 'internal scratch']
  %s0 = inlined_call_operand.hbm [shape: bf16[256,128], index: 0, kind: input, shape index: {}]
  %s1 = inlined_call_operand.vmem [shape: f32[1,128], index: 1, kind: input, shape index: {}]
  %s2 = inlined_call_operand.vmem [shape: f32[1,128], index: 2, kind: input, shape index: {}]
  %s3 = inlined_call_operand.hbm [shape: bf16[128,128], index: 3, kind: input, shape index: {}]
  %s4 = inlined_call_operand.hbm [shape: bf16[256,128], index: 4, kind: output, shape index: {}]
  %s5 = sld [smem:[#allocation0]]
  $region57: #{tpu_custom_call.1} parent=0
    _
  %s7 = ssub.s32 1, %s5
  %s8 = scalar_select 0, %s7, %s5
  $region1: #{tpu_custom_call.1} parent=0
    #allocation2 [shape = 'u8[65536]{0}', space=vmem, size = 0x10000, scoped, tag = 'input window, operand 0']
    #allocation3 [shape = 's32[2]{0}', space=sflag, size = 0x8, scoped, tag = 'scoped memory for tpu_custom_call.1']
    #allocation4 [shape = 's32[2]{0}', space=sflag, size = 0x8, scoped, tag = 'scoped memory for tpu_custom_call.1']
    #allocation5 [shape = 'u8[32768]{0}', space=vmem, size = 0x8000, scoped, tag = 'input window, operand 3, single buffered']
    #allocation6 [shape = 's32[1]{0}', space=sflag, size = 0x4, scoped, tag = 'scoped memory for tpu_custom_call.1']
    #allocation7 [shape = 'u8[65536]{0}', space=vmem, size = 0x10000, scoped, tag = 'output window, operand 0']
    %9 = vsyncpa [#allocation3], 0
    %s10 = scalar_lea.sflag [#allocation3], 1
    %11 = vsyncpa %s10, 0
    %12 = vsyncpa [#allocation6], 0
    %13 = vsyncpa [#allocation4], 0
    %s14 = scalar_lea.sflag [#allocation4], 1
    %15 = vsyncpa %s14, 0
    loop: start=0, step=1, limit=4
    $region2: #{tpu_custom_call.1} parent=1 // loop_pre_header
      _
    $region3: #{tpu_custom_call.1} parent=1 // loop_header
      %s17 = sphi 0, %s21
      %p18 = scmp.ge.s32.totalorder %s17, 4
      %s27 = sphi 0, %s29
      %s30 = sphi 0, %s27
      %s31 = sphi 0, %s30
      %s47 = sphi 0, %s31
      %s51 = sphi 0, %s51
      %s53 = sphi 0, %s51
      %s54 = sphi 0, %s53
      %s68 = sphi 0, %s54
      %s72 = sphi 0, %s72
      %s74 = sphi 0, %s72
      %s75 = sphi 0, %s74
      %s89 = sphi 0, %s75
      %s93 = sphi 0, %s93
      %s95 = sphi 0, %s93
      %s96 = sphi 0, %s95
      %s110 = sphi 0, %s96
      %s116 = sphi 0, %s118
      %s119 = sphi 0, %s116
      %s120 = sphi 0, %s119
      %s136 = sphi 0, %s120
    $region4: #{tpu_custom_call.1} parent=1 // loop_header_branch
      %20 = sbr.rel (%p18) target = $region8
    $region5: #{tpu_custom_call.1} parent=1 // loop_body
      %s22 = ssub.s32 %s17, 1
      %s23 = ssub.s32 %s17, 2
      %s24 = sadd.s32 %s17, 1
      %s25 = ssub.s32 %s17, %s24
      %p26 = scmp.eq.s32.totalorder %s25, 0
      %s28 = sadd.s32 %s27, 1
      %s29 = scalar_select %p26, %s27, %s28
      %p32 = pneg %p26
      %p33 = scmp.eq.s32.totalorder %s17, 1
      %p34 = por %p32, %p33
      %p35 = scmp.ne.s32.totalorder %s27, %s30
      %p36 = scmp.eq.s32.totalorder %s17, 0
      %p37 = por %p35, %p36
      %p38 = scmp.ne.s32.totalorder %s27, %s30
      %p39 = scmp.eq.s32.totalorder %s22, 1
      %p40 = por %p38, %p39
      %p41 = scmp.ne.s32.totalorder %s30, %s31
      %p42 = scmp.eq.s32.totalorder %s22, 0
      %p43 = por %p41, %p42
      %p44 = scmp.ne.s32.totalorder %s30, %s31
      %p45 = scmp.eq.s32.totalorder %s23, 1
      %p46 = por %p44, %p45
      %p48 = scmp.ne.s32.totalorder %s31, %s47
      %p49 = scmp.eq.s32.totalorder %s23, 0
      %p50 = por %p48, %p49
      %s52 = sadd.s32 %s51, 1
      %p55 = scmp.eq.s32.totalorder %s17, 1
      %p56 = scmp.ne.s32.totalorder %s51, %s53
      %p57 = scmp.eq.s32.totalorder %s17, 0
      %p58 = por %p56, %p57
      %p59 = scmp.ne.s32.totalorder %s51, %s53
      %p60 = scmp.eq.s32.totalorder %s22, 1
      %p61 = por %p59, %p60
      %p62 = scmp.ne.s32.totalorder %s53, %s54
      %p63 = scmp.eq.s32.totalorder %s22, 0
      %p64 = por %p62, %p63
      %p65 = scmp.ne.s32.totalorder %s53, %s54
      %p66 = scmp.eq.s32.totalorder %s23, 1
      %p67 = por %p65, %p66
      %p69 = scmp.ne.s32.totalorder %s54, %s68
      %p70 = scmp.eq.s32.totalorder %s23, 0
      %p71 = por %p69, %p70
      %s73 = sadd.s32 %s72, 1
      %p76 = scmp.eq.s32.totalorder %s17, 1
      %p77 = scmp.ne.s32.totalorder %s72, %s74
      %p78 = scmp.eq.s32.totalorder %s17, 0
      %p79 = por %p77, %p78
      %p80 = scmp.ne.s32.totalorder %s72, %s74
      %p81 = scmp.eq.s32.totalorder %s22, 1
      %p82 = por %p80, %p81
      %p83 = scmp.ne.s32.totalorder %s74, %s75
      %p84 = scmp.eq.s32.totalorder %s22, 0
      %p85 = por %p83, %p84
      %p86 = scmp.ne.s32.totalorder %s74, %s75
      %p87 = scmp.eq.s32.totalorder %s23, 1
      %p88 = por %p86, %p87
      %p90 = scmp.ne.s32.totalorder %s75, %s89
      %p91 = scmp.eq.s32.totalorder %s23, 0
      %p92 = por %p90, %p91
      %s94 = sadd.s32 %s93, 1
      %p97 = scmp.eq.s32.totalorder %s17, 1
      %p98 = scmp.ne.s32.totalorder %s93, %s95
      %p99 = scmp.eq.s32.totalorder %s17, 0
      %p100 = por %p98, %p99
      %p101 = scmp.ne.s32.totalorder %s93, %s95
      %p102 = scmp.eq.s32.totalorder %s22, 1
      %p103 = por %p101, %p102
      %p104 = scmp.ne.s32.totalorder %s95, %s96
      %p105 = scmp.eq.s32.totalorder %s22, 0
      %p106 = por %p104, %p105
      %p107 = scmp.ne.s32.totalorder %s95, %s96
      %p108 = scmp.eq.s32.totalorder %s23, 1
      %p109 = por %p107, %p108
      %p111 = scmp.ne.s32.totalorder %s96, %s110
      %p112 = scmp.eq.s32.totalorder %s23, 0
      %p113 = por %p111, %p112
      %s114 = ssub.s32 %s17, %s24
      %p115 = scmp.eq.s32.totalorder %s114, 0
      %s117 = sadd.s32 %s116, 1
      %s118 = scalar_select %p115, %s116, %s117
      %p121 = pneg %p115
      %p122 = scmp.eq.s32.totalorder %s17, 1
      %p123 = por %p121, %p122
      %p124 = scmp.ne.s32.totalorder %s116, %s119
      %p125 = scmp.eq.s32.totalorder %s17, 0
      %p126 = por %p124, %p125
      %p127 = scmp.ne.s32.totalorder %s116, %s119
      %p128 = scmp.eq.s32.totalorder %s22, 1
      %p129 = por %p127, %p128
      %p130 = scmp.ne.s32.totalorder %s119, %s120
      %p131 = scmp.eq.s32.totalorder %s22, 0
      %p132 = por %p130, %p131
      %p133 = scmp.ne.s32.totalorder %s119, %s120
      %p134 = scmp.eq.s32.totalorder %s23, 1
      %p135 = por %p133, %p134
      %p137 = scmp.ne.s32.totalorder %s120, %s136
      %p138 = scmp.eq.s32.totalorder %s23, 0
      %p139 = por %p137, %p138
      %p140 = scmp.le.s32.totalorder 1, %s17
      %p141 = scmp.lt.s32.totalorder %s17, 3
      %p142 = pnand %p140, %p141
      %p143 = pneg %p142
      // Predicated region
      $region9: #{tpu_custom_call.1} parent=5 // pred_check
        _
      $region10: #{tpu_custom_call.1} parent=5 // pred_check_branch
        %145 = sbr.rel (%p142) target = $region12
      $region11: #{tpu_custom_call.1} parent=5 // pred_region
        %s146 = ssub.s32 %s17, 1
        // Predicated region
        $region13: #{tpu_custom_call.1} parent=11 // pred_check
          %p147 = pneg %p64
        $region14: #{tpu_custom_call.1} parent=11 // pred_check_branch
          %149 = sbr.rel (%p147) target = $region16
        $region15: #{tpu_custom_call.1} parent=11 // pred_region
          _
        $region16: #{tpu_custom_call.1} parent=11 // pred_fallthru
          _
        // Predicated region
        $region17: #{tpu_custom_call.1} parent=11 // pred_check
          %p150 = pneg %p85
        $region18: #{tpu_custom_call.1} parent=11 // pred_check_branch
          %152 = sbr.rel (%p150) target = $region20
        $region19: #{tpu_custom_call.1} parent=11 // pred_region
          _
        $region20: #{tpu_custom_call.1} parent=11 // pred_fallthru
          _
        // Predicated region
        $region21: #{tpu_custom_call.1} parent=11 // pred_check
          %p153 = pneg %p106
        $region22: #{tpu_custom_call.1} parent=11 // pred_check_branch
          %155 = sbr.rel (%p153) target = $region24
        $region23: #{tpu_custom_call.1} parent=11 // pred_region
          %s157 = ssub.s32 1024, 1024
          %158 = vsyncadd [#allocation6], %s157
          %s159 = sshll.u32 [#allocation5], 4
          %s160 = int_to_ptr.vmem [resolvable:$true] %s159
          %165 = dma.hbm_to_vmem [thread:$0]  %s3, 1024, %s160, [#allocation6], 64, 64, 4
        $region24: #{tpu_custom_call.1} parent=11 // pred_fallthru
          _
      $region12: #{tpu_custom_call.1} parent=5 // pred_fallthru
        _
      %p166 = scmp.lt.s32.totalorder %s17, 2
      // Predicated region
      $region25: #{tpu_custom_call.1} parent=5 // pred_check
        %p167 = pneg %p166
      $region26: #{tpu_custom_call.1} parent=5 // pred_check_branch
        %169 = sbr.rel (%p167) target = $region28
      $region27: #{tpu_custom_call.1} parent=5 // pred_region
        // Predicated region
        $region29: #{tpu_custom_call.1} parent=27 // pred_check
          %p170 = pneg %p37
        $region30: #{tpu_custom_call.1} parent=27 // pred_check_branch
          %172 = sbr.rel (%p170) target = $region32
        $region31: #{tpu_custom_call.1} parent=27 // pred_region
          %s173 = sand.u32 %s27, 1
          %s174 = scalar_lea.sflag [#allocation3], %s173
          %s175 = sand.u32 %s27, 1
          %s176 = smul.addr %s175, 64
          %s177 = scalar_lea.vmem [#allocation2], %s176
          %s178 = smul.u32 16, %s17
          %s180 = ssub.s32 1024, 1024
          %181 = vsyncadd %s174, %s180
          %s182 = smul.addr %s178, 64
          %s183 = scalar_lea.hbm %s0, %s182
          %s184 = sshll.u32 %s177, 4
          %s185 = int_to_ptr.vmem [resolvable:$true] %s184
          %190 = dma.hbm_to_vmem [thread:$0]  %s183, 1024, %s185, %s174, 64, 64, 4
        $region32: #{tpu_custom_call.1} parent=27 // pred_fallthru
          _
      $region28: #{tpu_custom_call.1} parent=5 // pred_fallthru
        _
      %p191 = scmp.le.s32.totalorder 1, %s17
      %p192 = scmp.lt.s32.totalorder %s17, 3
      %p193 = pnand %p191, %p192
      %p194 = pneg %p193
      // Predicated region
      $region33: #{tpu_custom_call.1} parent=5 // pred_check
        _
      $region34: #{tpu_custom_call.1} parent=5 // pred_check_branch
        %196 = sbr.rel (%p193) target = $region36
      $region35: #{tpu_custom_call.1} parent=5 // pred_region
        %s197 = ssub.s32 %s17, 1
        %s198 = sand.u32 %s30, 1
        %s199 = scalar_lea.sflag [#allocation3], %s198
        %s200 = sand.u32 %s30, 1
        %s201 = smul.addr %s200, 64
        %s202 = scalar_lea.vmem [#allocation2], %s201
        // Predicated region
        $region37: #{tpu_custom_call.1} parent=35 // pred_check
          %p203 = pneg %p43
        $region38: #{tpu_custom_call.1} parent=35 // pred_check_branch
          %205 = sbr.rel (%p203) target = $region40
        $region39: #{tpu_custom_call.1} parent=35 // pred_region
          %206 = dma.done %s199, 1024
        $region40: #{tpu_custom_call.1} parent=35 // pred_fallthru
          _
        // Predicated region
        $region41: #{tpu_custom_call.1} parent=35 // pred_check
          %p207 = pneg %p106
        $region42: #{tpu_custom_call.1} parent=35 // pred_check_branch
          %209 = sbr.rel (%p207) target = $region44
        $region43: #{tpu_custom_call.1} parent=35 // pred_region
          %210 = dma.done [#allocation6], 1024
        $region44: #{tpu_custom_call.1} parent=35 // pred_fallthru
          _
        %s211 = sand.u32 %s30, 1
        %s212 = scalar_lea.sflag [#allocation3], %s211
        %s213 = sand.u32 %s30, 1
        %s214 = smul.addr %s213, 64
        %s215 = scalar_lea.vmem [#allocation2], %s214
        %p216 = pneg %p43
        %p217 = pneg %p40
        %p218 = pneg %p64
        %p219 = pneg %p61
        %p220 = pneg %p85
        %p221 = pneg %p82
        %p222 = pneg %p106
        %p223 = pneg %p103
        %p224 = pneg %p132
        %p225 = pneg %p129
        %s226 = sand.u32 %s119, 1
        %s227 = scalar_lea.sflag [#allocation4], %s226
        %s228 = sand.u32 %s119, 1
        %s229 = smul.addr %s228, 64
        %s230 = scalar_lea.vmem [#allocation7], %s229
        %s231 = smul.u32 16, %s22
        %s232 = smul.u32 16, %s22
        %v234 = vld [vmem:[%s202] sm:$0xf]
        %v235 = vld [vmem:[%s202 + $0x4] sm:$0xf]
        %v236 = vld [vmem:[%s202 + $0x8] sm:$0xf]
        %v237 = vld [vmem:[%s202 + $0xc] sm:$0xf]
        %v238 = vld [vmem:[%s202 + $0x10] sm:$0xf]
        %v239 = vld [vmem:[%s202 + $0x14] sm:$0xf]
        %v240 = vld [vmem:[%s202 + $0x18] sm:$0xf]
        %v241 = vld [vmem:[%s202 + $0x1c] sm:$0xf]
        %v242 = vld [vmem:[%s202 + $0x20] sm:$0xf]
        %v243 = vld [vmem:[%s202 + $0x24] sm:$0xf]
        %v244 = vld [vmem:[%s202 + $0x28] sm:$0xf]
        %v245 = vld [vmem:[%s202 + $0x2c] sm:$0xf]
        %v246 = vld [vmem:[%s202 + $0x30] sm:$0xf]
        %v247 = vld [vmem:[%s202 + $0x34] sm:$0xf]
        %v248 = vld [vmem:[%s202 + $0x38] sm:$0xf]
        %v249 = vld [vmem:[%s202 + $0x3c] sm:$0xf]
        %v250 = vunpack.c.l.bf16 %v234
        %v251 = vunpack.c.l.bf16 %v235
        %v252 = vunpack.c.l.bf16 %v236
        %v253 = vunpack.c.l.bf16 %v237
        %v254 = vunpack.c.l.bf16 %v238
        %v255 = vunpack.c.l.bf16 %v239
        %v256 = vunpack.c.l.bf16 %v240
        %v257 = vunpack.c.l.bf16 %v241
        %v258 = vunpack.c.l.bf16 %v242
        %v259 = vunpack.c.l.bf16 %v243
        %v260 = vunpack.c.l.bf16 %v244
        %v261 = vunpack.c.l.bf16 %v245
        %v262 = vunpack.c.l.bf16 %v246
        %v263 = vunpack.c.l.bf16 %v247
        %v264 = vunpack.c.l.bf16 %v248
        %v265 = vunpack.c.l.bf16 %v249
        %266 = vadd.xlane.f32.xlu0 %v250
        %v267 = vpop.xlane.xlu0 %266
        %268 = vadd.xlane.f32.xlu0 %v251
        %v269 = vpop.xlane.xlu0 %268
        %270 = vadd.xlane.f32.xlu0 %v252
        %v271 = vpop.xlane.xlu0 %270
        %272 = vadd.xlane.f32.xlu0 %v253
        %v273 = vpop.xlane.xlu0 %272
        %274 = vadd.xlane.f32.xlu0 %v254
        %v275 = vpop.xlane.xlu0 %274
        %276 = vadd.xlane.f32.xlu0 %v255
        %v277 = vpop.xlane.xlu0 %276
        %278 = vadd.xlane.f32.xlu0 %v256
        %v279 = vpop.xlane.xlu0 %278
        %280 = vadd.xlane.f32.xlu0 %v257
        %v281 = vpop.xlane.xlu0 %280
        %282 = vadd.xlane.f32.xlu0 %v258
        %v283 = vpop.xlane.xlu0 %282
        %284 = vadd.xlane.f32.xlu0 %v259
        %v285 = vpop.xlane.xlu0 %284
        %286 = vadd.xlane.f32.xlu0 %v260
        %v287 = vpop.xlane.xlu0 %286
        %288 = vadd.xlane.f32.xlu0 %v261
        %v289 = vpop.xlane.xlu0 %288
        %290 = vadd.xlane.f32.xlu0 %v262
        %v291 = vpop.xlane.xlu0 %290
        %292 = vadd.xlane.f32.xlu0 %v263
        %v293 = vpop.xlane.xlu0 %292
        %294 = vadd.xlane.f32.xlu0 %v264
        %v295 = vpop.xlane.xlu0 %294
        %296 = vadd.xlane.f32.xlu0 %v265
        %v297 = vpop.xlane.xlu0 %296
        %v298 = vrcp.pop 128.0
        %v299 = vmul.f32 %v267, %v298
        %v300 = vmul.f32 %v269, %v298
        %v301 = vmul.f32 %v271, %v298
        %v302 = vmul.f32 %v273, %v298
        %v303 = vmul.f32 %v275, %v298
        %v304 = vmul.f32 %v277, %v298
        %v305 = vmul.f32 %v279, %v298
        %v306 = vmul.f32 %v281, %v298
        %v307 = vmul.f32 %v283, %v298
        %v308 = vmul.f32 %v285, %v298
        %v309 = vmul.f32 %v287, %v298
        %v310 = vmul.f32 %v289, %v298
        %v311 = vmul.f32 %v291, %v298
        %v312 = vmul.f32 %v293, %v298
        %v313 = vmul.f32 %v295, %v298
        %v314 = vmul.f32 %v297, %v298
        %v315 = vsub.f32 %v250, %v299
        %v316 = vsub.f32 %v251, %v300
        %v317 = vsub.f32 %v252, %v301
        %v318 = vsub.f32 %v253, %v302
        %v319 = vsub.f32 %v254, %v303
        %v320 = vsub.f32 %v255, %v304
        %v321 = vsub.f32 %v256, %v305
        %v322 = vsub.f32 %v257, %v306
        %v323 = vsub.f32 %v258, %v307
        %v324 = vsub.f32 %v259, %v308
        %v325 = vsub.f32 %v260, %v309
        %v326 = vsub.f32 %v261, %v310
        %v327 = vsub.f32 %v262, %v311
        %v328 = vsub.f32 %v263, %v312
        %v329 = vsub.f32 %v264, %v313
        %v330 = vsub.f32 %v265, %v314
        %v331 = vmul.f32 %v315, %v315
        %v332 = vmul.f32 %v316, %v316
        %v333 = vmul.f32 %v317, %v317
        %v334 = vmul.f32 %v318, %v318
        %v335 = vmul.f32 %v319, %v319
        %v336 = vmul.f32 %v320, %v320
        %v337 = vmul.f32 %v321, %v321
        %v338 = vmul.f32 %v322, %v322
        %v339 = vmul.f32 %v323, %v323
        %v340 = vmul.f32 %v324, %v324
        %v341 = vmul.f32 %v325, %v325
        %v342 = vmul.f32 %v326, %v326
        %v343 = vmul.f32 %v327, %v327
        %v344 = vmul.f32 %v328, %v328
        %v345 = vmul.f32 %v329, %v329
        %v346 = vmul.f32 %v330, %v330
        %347 = vadd.xlane.f32.xlu0 %v331
        %v348 = vpop.xlane.xlu0 %347
        %349 = vadd.xlane.f32.xlu0 %v332
        %v350 = vpop.xlane.xlu0 %349
        %351 = vadd.xlane.f32.xlu0 %v333
        %v352 = vpop.xlane.xlu0 %351
        %353 = vadd.xlane.f32.xlu0 %v334
        %v354 = vpop.xlane.xlu0 %353
        %355 = vadd.xlane.f32.xlu0 %v335
        %v356 = vpop.xlane.xlu0 %355
        %357 = vadd.xlane.f32.xlu0 %v336
        %v358 = vpop.xlane.xlu0 %357
        %359 = vadd.xlane.f32.xlu0 %v337
        %v360 = vpop.xlane.xlu0 %359
        %361 = vadd.xlane.f32.xlu0 %v338
        %v362 = vpop.xlane.xlu0 %361
        %363 = vadd.xlane.f32.xlu0 %v339
        %v364 = vpop.xlane.xlu0 %363
        %365 = vadd.xlane.f32.xlu0 %v340
        %v366 = vpop.xlane.xlu0 %365
        %367 = vadd.xlane.f32.xlu0 %v341
        %v368 = vpop.xlane.xlu0 %367
        %369 = vadd.xlane.f32.xlu0 %v342
        %v370 = vpop.xlane.xlu0 %369
        %371 = vadd.xlane.f32.xlu0 %v343
        %v372 = vpop.xlane.xlu0 %371
        %373 = vadd.xlane.f32.xlu0 %v344
        %v374 = vpop.xlane.xlu0 %373
        %375 = vadd.xlane.f32.xlu0 %v345
        %v376 = vpop.xlane.xlu0 %375
        %377 = vadd.xlane.f32.xlu0 %v346
        %v378 = vpop.xlane.xlu0 %377
        %v379 = vmul.f32 %v348, %v298
        %v380 = vmul.f32 %v350, %v298
        %v381 = vmul.f32 %v352, %v298
        %v382 = vmul.f32 %v354, %v298
        %v383 = vmul.f32 %v356, %v298
        %v384 = vmul.f32 %v358, %v298
        %v385 = vmul.f32 %v360, %v298
        %v386 = vmul.f32 %v362, %v298
        %v387 = vmul.f32 %v364, %v298
        %v388 = vmul.f32 %v366, %v298
        %v389 = vmul.f32 %v368, %v298
        %v390 = vmul.f32 %v370, %v298
        %v391 = vmul.f32 %v372, %v298
        %v392 = vmul.f32 %v374, %v298
        %v393 = vmul.f32 %v376, %v298
        %v394 = vmul.f32 %v378, %v298
        %v395 = vadd.f32 %v379, 1e-05
        %v396 = vadd.f32 %v380, 1e-05
        %v397 = vadd.f32 %v381, 1e-05
        %v398 = vadd.f32 %v382, 1e-05
        %v399 = vadd.f32 %v383, 1e-05
        %v400 = vadd.f32 %v384, 1e-05
        %v401 = vadd.f32 %v385, 1e-05
        %v402 = vadd.f32 %v386, 1e-05
        %v403 = vadd.f32 %v387, 1e-05
        %v404 = vadd.f32 %v388, 1e-05
        %v405 = vadd.f32 %v389, 1e-05
        %v406 = vadd.f32 %v390, 1e-05
        %v407 = vadd.f32 %v391, 1e-05
        %v408 = vadd.f32 %v392, 1e-05
        %v409 = vadd.f32 %v393, 1e-05
        %v410 = vadd.f32 %v394, 1e-05
        %v411 = vrsqrt.pop %v395
        %v412 = vrsqrt.pop %v396
        %v413 = vrsqrt.pop %v397
        %v414 = vrsqrt.pop %v398
        %v415 = vrsqrt.pop %v399
        %v416 = vrsqrt.pop %v400
        %v417 = vrsqrt.pop %v401
        %v418 = vrsqrt.pop %v402
        %v419 = vrsqrt.pop %v403
        %v420 = vrsqrt.pop %v404
        %v421 = vrsqrt.pop %v405
        %v422 = vrsqrt.pop %v406
        %v423 = vrsqrt.pop %v407
        %v424 = vrsqrt.pop %v408
        %v425 = vrsqrt.pop %v409
        %v426 = vrsqrt.pop %v410
        %v427 = vmul.f32 %v315, %v411
        %v428 = vmul.f32 %v316, %v412
        %v429 = vmul.f32 %v317, %v413
        %v430 = vmul.f32 %v318, %v414
        %v431 = vmul.f32 %v319, %v415
        %v432 = vmul.f32 %v320, %v416
        %v433 = vmul.f32 %v321, %v417
        %v434 = vmul.f32 %v322, %v418
        %v435 = vmul.f32 %v323, %v419
        %v436 = vmul.f32 %v324, %v420
        %v437 = vmul.f32 %v325, %v421
        %v438 = vmul.f32 %v326, %v422
        %v439 = vmul.f32 %v327, %v423
        %v440 = vmul.f32 %v328, %v424
        %v441 = vmul.f32 %v329, %v425
        %v442 = vmul.f32 %v330, %v426
        %v443 = vld [vmem:[%s1] sm:$0x1]
        %v445 = vlaneseq
        %v446 = vshrl.u32 %v445, 7
        %v447 = vsub.s32 0, %v446
        %v448 = vrot.slane %v443, %v447
        %v450 = vmul.f32 %v427, %v448
        %v451 = vmul.f32 %v428, %v448
        %v452 = vmul.f32 %v429, %v448
        %v453 = vmul.f32 %v430, %v448
        %v454 = vmul.f32 %v431, %v448
        %v455 = vmul.f32 %v432, %v448
        %v456 = vmul.f32 %v433, %v448
        %v457 = vmul.f32 %v434, %v448
        %v458 = vmul.f32 %v435, %v448
        %v459 = vmul.f32 %v436, %v448
        %v460 = vmul.f32 %v437, %v448
        %v461 = vmul.f32 %v438, %v448
        %v462 = vmul.f32 %v439, %v448
        %v463 = vmul.f32 %v440, %v448
        %v464 = vmul.f32 %v441, %v448
        %v465 = vmul.f32 %v442, %v448
        %v466 = vld [vmem:[%s2] sm:$0x1]
        %v468 = vlaneseq
        %v469 = vshrl.u32 %v468, 7
        %v470 = vsub.s32 0, %v469
        %v471 = vrot.slane %v466, %v470
        %v473 = vadd.f32 %v450, %v471
        %v474 = vadd.f32 %v451, %v471
        %v475 = vadd.f32 %v452, %v471
        %v476 = vadd.f32 %v453, %v471
        %v477 = vadd.f32 %v454, %v471
        %v478 = vadd.f32 %v455, %v471
        %v479 = vadd.f32 %v456, %v471
        %v480 = vadd.f32 %v457, %v471
        %v481 = vadd.f32 %v458, %v471
        %v482 = vadd.f32 %v459, %v471
        %v483 = vadd.f32 %v460, %v471
        %v484 = vadd.f32 %v461, %v471
        %v485 = vadd.f32 %v462, %v471
        %v486 = vadd.f32 %v463, %v471
        %v487 = vadd.f32 %v464, %v471
        %v488 = vadd.f32 %v465, %v471
        %v489 = vpack.c.bf16 %v474, %v473
        %v490 = vpack.c.bf16 %v476, %v475
        %v491 = vpack.c.bf16 %v478, %v477
        %v492 = vpack.c.bf16 %v480, %v479
        %v493 = vpack.c.bf16 %v482, %v481
        %v494 = vpack.c.bf16 %v484, %v483
        %v495 = vpack.c.bf16 %v486, %v485
        %v496 = vpack.c.bf16 %v488, %v487
        %v497 = vld [vmem:[#allocation5] sm:$0xf]
        %v498 = vld [vmem:[#allocation5 + $0x4] sm:$0xf]
        %v499 = vld [vmem:[#allocation5 + $0x8] sm:$0xf]
        %v500 = vld [vmem:[#allocation5 + $0xc] sm:$0xf]
        %v501 = vld [vmem:[#allocation5 + $0x10] sm:$0xf]
        %v502 = vld [vmem:[#allocation5 + $0x14] sm:$0xf]
        %v503 = vld [vmem:[#allocation5 + $0x18] sm:$0xf]
        %v504 = vld [vmem:[#allocation5 + $0x1c] sm:$0xf]
        %v505 = vld [vmem:[#allocation5 + $0x20] sm:$0xf]
        %v506 = vld [vmem:[#allocation5 + $0x24] sm:$0xf]
        %v507 = vld [vmem:[#allocation5 + $0x28] sm:$0xf]
        %v508 = vld [vmem:[#allocation5 + $0x2c] sm:$0xf]
        %v509 = vld [vmem:[#allocation5 + $0x30] sm:$0xf]
        %v510 = vld [vmem:[#allocation5 + $0x34] sm:$0xf]
        %v511 = vld [vmem:[#allocation5 + $0x38] sm:$0xf]
        %v512 = vld [vmem:[#allocation5 + $0x3c] sm:$0xf]
        %v529 = vunpack.c.l.b16 %v497
        %v530 = vunpack.c.l.b16 %v498
        %v531 = vunpack.c.l.b16 %v499
        %v532 = vunpack.c.l.b16 %v500
        %v533 = vunpack.c.l.b16 %v501
        %v534 = vunpack.c.l.b16 %v502
        %v535 = vunpack.c.l.b16 %v503
        %v536 = vunpack.c.l.b16 %v504
        %v537 = vunpack.c.l.b16 %v505
        %v538 = vunpack.c.l.b16 %v506
        %v539 = vunpack.c.l.b16 %v507
        %v540 = vunpack.c.l.b16 %v508
        %v541 = vunpack.c.l.b16 %v509
        %v542 = vunpack.c.l.b16 %v510
        %v543 = vunpack.c.l.b16 %v511
        %v544 = vunpack.c.l.b16 %v512
        %v545 = vpack.c.b16 %v530, %v529
        %v546 = vpack.c.b16 %v532, %v531
        %v547 = vpack.c.b16 %v534, %v533
        %v548 = vpack.c.b16 %v536, %v535
        %v549 = vpack.c.b16 %v538, %v537
        %v550 = vpack.c.b16 %v540, %v539
        %v551 = vpack.c.b16 %v542, %v541
        %v552 = vpack.c.b16 %v544, %v543
        %561 = vmatprep.subr.bf16.mxu0 0
        %562 = vmatpush1.bf16.msra.mxu0 %v552
        %563 = vmatprep.subr.bf16.mxu0 0
        %564 = vmatpush1.bf16.msra.mxu0 %v551
        %565 = vmatprep.subr.bf16.mxu0 0
        %566 = vmatpush1.bf16.msra.mxu0 %v550
        %567 = vmatprep.subr.bf16.mxu0 0
        %568 = vmatpush1.bf16.msra.mxu0 %v549
        %569 = vmatprep.subr.bf16.mxu0 0
        %570 = vmatpush1.bf16.msra.mxu0 %v548
        %571 = vmatprep.subr.bf16.mxu0 0
        %572 = vmatpush1.bf16.msra.mxu0 %v547
        %573 = vmatprep.subr.bf16.mxu0 0
        %574 = vmatpush1.bf16.msra.mxu0 %v546
        %575 = vmatprep.subr.bf16.mxu0 0
        %576 = vmatpush1.bf16.msra.mxu0 %v545
        %577 = vmatprep.subr.bf16.mxu0 0
        %578 = vmatpush2.bf16.msra.mxu0 0
        %579 = vmatprep.subr.bf16.mxu0 0
        %580 = vmatpush2.bf16.msra.mxu0 0
        %581 = vmatprep.subr.bf16.mxu0 0
        %582 = vmatpush2.bf16.msra.mxu0 0
        %583 = vmatprep.subr.bf16.mxu0 0
        %584 = vmatpush2.bf16.msra.mxu0 0
        %585 = vmatprep.subr.bf16.mxu0 0
        %586 = vmatpush2.bf16.msra.mxu0 0
        %587 = vmatprep.subr.bf16.mxu0 0
        %588 = vmatpush2.bf16.msra.mxu0 0
        %589 = vmatprep.subr.bf16.mxu0 0
        %590 = vmatpush2.bf16.msra.mxu0 0
        %591 = vmatprep.subr.bf16.mxu0 0
        %592 = vmatpush2.bf16.msra.mxu0 0
        %593 = vmatprep.mubr.bf16.mxu0 0
        %594 = vmatmul.mubr.bf16.gmra.mxu0 %v489
        %v595 = vpop.f32.mrf.mxu0
        %v596 = vadd.f32 0.0, %v595
        %v597 = vpop.f32.mrf.mxu0
        %v598 = vpop.f32.mrf.mxu0
        %v599 = vadd.f32 0.0, %v598
        %v600 = vpop.f32.mrf.mxu0
        %601 = vmatprep.mubr.bf16.mxu0 0
        %602 = vmatmul.mubr.bf16.gmra.mxu0 %v490
        %v603 = vpop.f32.mrf.mxu0
        %v604 = vadd.f32 0.0, %v603
        %v605 = vpop.f32.mrf.mxu0
        %v606 = vpop.f32.mrf.mxu0
        %v607 = vadd.f32 0.0, %v606
        %v608 = vpop.f32.mrf.mxu0
        %609 = vmatprep.mubr.bf16.mxu0 0
        %610 = vmatmul.mubr.bf16.gmra.mxu0 %v491
        %v611 = vpop.f32.mrf.mxu0
        %v612 = vadd.f32 0.0, %v611
        %v613 = vpop.f32.mrf.mxu0
        %v614 = vpop.f32.mrf.mxu0
        %v615 = vadd.f32 0.0, %v614
        %v616 = vpop.f32.mrf.mxu0
        %617 = vmatprep.mubr.bf16.mxu0 0
        %618 = vmatmul.mubr.bf16.gmra.mxu0 %v492
        %v619 = vpop.f32.mrf.mxu0
        %v620 = vadd.f32 0.0, %v619
        %v621 = vpop.f32.mrf.mxu0
        %v622 = vpop.f32.mrf.mxu0
        %v623 = vadd.f32 0.0, %v622
        %v624 = vpop.f32.mrf.mxu0
        %625 = vmatprep.mubr.bf16.mxu0 0
        %626 = vmatmul.mubr.bf16.gmra.mxu0 %v493
        %v627 = vpop.f32.mrf.mxu0
        %v628 = vadd.f32 0.0, %v627
        %v629 = vpop.f32.mrf.mxu0
        %v630 = vpop.f32.mrf.mxu0
        %v631 = vadd.f32 0.0, %v630
        %v632 = vpop.f32.mrf.mxu0
        %633 = vmatprep.mubr.bf16.mxu0 0
        %634 = vmatmul.mubr.bf16.gmra.mxu0 %v494
        %v635 = vpop.f32.mrf.mxu0
        %v636 = vadd.f32 0.0, %v635
        %v637 = vpop.f32.mrf.mxu0
        %v638 = vpop.f32.mrf.mxu0
        %v639 = vadd.f32 0.0, %v638
        %v640 = vpop.f32.mrf.mxu0
        %641 = vmatprep.mubr.bf16.mxu0 0
        %642 = vmatmul.mubr.bf16.gmra.mxu0 %v495
        %v643 = vpop.f32.mrf.mxu0
        %v644 = vadd.f32 0.0, %v643
        %v645 = vpop.f32.mrf.mxu0
        %v646 = vpop.f32.mrf.mxu0
        %v647 = vadd.f32 0.0, %v646
        %v648 = vpop.f32.mrf.mxu0
        %649 = vmatprep.mubr.bf16.mxu0 0
        %650 = vmatmul.mubr.bf16.gmra.mxu0 %v496
        %v651 = vpop.f32.mrf.mxu0
        %v652 = vadd.f32 0.0, %v651
        %v653 = vpop.f32.mrf.mxu0
        %v654 = vpop.f32.mrf.mxu0
        %v655 = vadd.f32 0.0, %v654
        %v656 = vpop.f32.mrf.mxu0
        %657 = vdwg.mxu0
        %v658 = vpack.c.bf16 %v599, %v596
        %v659 = vpack.c.bf16 %v607, %v604
        %v660 = vpack.c.bf16 %v615, %v612
        %v661 = vpack.c.bf16 %v623, %v620
        %v662 = vpack.c.bf16 %v631, %v628
        %v663 = vpack.c.bf16 %v639, %v636
        %v664 = vpack.c.bf16 %v647, %v644
        %v665 = vpack.c.bf16 %v655, %v652
        %v674 = vunpack.c.l.b16 %v658
        %v675 = vunpack.c.h.b16 %v658
        %v676 = vunpack.c.l.b16 %v659
        %v677 = vunpack.c.h.b16 %v659
        %v678 = vunpack.c.l.b16 %v660
        %v679 = vunpack.c.h.b16 %v660
        %v680 = vunpack.c.l.b16 %v661
        %v681 = vunpack.c.h.b16 %v661
        %v682 = vunpack.c.l.b16 %v662
        %v683 = vunpack.c.h.b16 %v662
        %v684 = vunpack.c.l.b16 %v663
        %v685 = vunpack.c.h.b16 %v663
        %v686 = vunpack.c.l.b16 %v664
        %v687 = vunpack.c.h.b16 %v664
        %v688 = vunpack.c.l.b16 %v665
        %v689 = vunpack.c.h.b16 %v665
        %v690 = vpack.c.b16 %v674, %v674
        %v691 = vpack.c.b16 %v675, %v675
        %v692 = vpack.c.b16 %v676, %v676
        %v693 = vpack.c.b16 %v677, %v677
        %v694 = vpack.c.b16 %v678, %v678
        %v695 = vpack.c.b16 %v679, %v679
        %v696 = vpack.c.b16 %v680, %v680
        %v697 = vpack.c.b16 %v681, %v681
        %v698 = vpack.c.b16 %v682, %v682
        %v699 = vpack.c.b16 %v683, %v683
        %v700 = vpack.c.b16 %v684, %v684
        %v701 = vpack.c.b16 %v685, %v685
        %v702 = vpack.c.b16 %v686, %v686
        %v703 = vpack.c.b16 %v687, %v687
        %v704 = vpack.c.b16 %v688, %v688
        %v705 = vpack.c.b16 %v689, %v689
        %722 = vst [vmem:[%s230] sm:$0xf] %v690
        %723 = vst [vmem:[%s230 + $0x4] sm:$0xf] %v691
        %724 = vst [vmem:[%s230 + $0x8] sm:$0xf] %v692
        %725 = vst [vmem:[%s230 + $0xc] sm:$0xf] %v693
        %726 = vst [vmem:[%s230 + $0x10] sm:$0xf] %v694
        %727 = vst [vmem:[%s230 + $0x14] sm:$0xf] %v695
        %728 = vst [vmem:[%s230 + $0x18] sm:$0xf] %v696
        %729 = vst [vmem:[%s230 + $0x1c] sm:$0xf] %v697
        %730 = vst [vmem:[%s230 + $0x20] sm:$0xf] %v698
        %731 = vst [vmem:[%s230 + $0x24] sm:$0xf] %v699
        %732 = vst [vmem:[%s230 + $0x28] sm:$0xf] %v700
        %733 = vst [vmem:[%s230 + $0x2c] sm:$0xf] %v701
        %734 = vst [vmem:[%s230 + $0x30] sm:$0xf] %v702
        %735 = vst [vmem:[%s230 + $0x34] sm:$0xf] %v703
        %736 = vst [vmem:[%s230 + $0x38] sm:$0xf] %v704
        %737 = vst [vmem:[%s230 + $0x3c] sm:$0xf] %v705
        %s738 = sand.u32 %s119, 1
        %s739 = scalar_lea.sflag [#allocation4], %s738
        %s740 = sand.u32 %s119, 1
        %s741 = smul.addr %s740, 64
        %s742 = scalar_lea.vmem [#allocation7], %s741
        // Predicated region
        $region45: #{tpu_custom_call.1} parent=35 // pred_check
          %p743 = pneg %p129
        $region46: #{tpu_custom_call.1} parent=35 // pred_check_branch
          %745 = sbr.rel (%p743) target = $region48
        $region47: #{tpu_custom_call.1} parent=35 // pred_region
          %s746 = smul.u32 16, %s22
          %s748 = ssub.s32 1024, 1024
          %749 = vsyncadd %s739, %s748
          %s750 = smul.addr %s746, 64
          %s751 = scalar_lea.hbm %s4, %s750
          %s752 = sshll.u32 %s742, 4
          %s753 = int_to_ptr.vmem [resolvable:$true] %s752
          %758 = dma.vmem_to_hbm [thread:$0]  %s753, 1024, %s751, %s739, 64, 64, 4
        $region48: #{tpu_custom_call.1} parent=35 // pred_fallthru
          _
      $region36: #{tpu_custom_call.1} parent=5 // pred_fallthru
        _
      %p759 = scmp.le.s32.totalorder 2, %s17
      // Predicated region
      $region49: #{tpu_custom_call.1} parent=5 // pred_check
        %p760 = pneg %p759
      $region50: #{tpu_custom_call.1} parent=5 // pred_check_branch
        %762 = sbr.rel (%p760) target = $region52
      $region51: #{tpu_custom_call.1} parent=5 // pred_region
        %s763 = ssub.s32 %s17, 2
        // Predicated region
        $region53: #{tpu_custom_call.1} parent=51 // pred_check
          %p764 = pneg %p135
        $region54: #{tpu_custom_call.1} parent=51 // pred_check_branch
          %766 = sbr.rel (%p764) target = $region56
        $region55: #{tpu_custom_call.1} parent=51 // pred_region
          %s767 = sand.u32 %s120, 1
          %s768 = scalar_lea.sflag [#allocation4], %s767
          %s769 = sand.u32 %s120, 1
          %s770 = smul.addr %s769, 64
          %s771 = scalar_lea.vmem [#allocation7], %s770
          %772 = dma.done %s768, 1024
        $region56: #{tpu_custom_call.1} parent=51 // pred_fallthru
          _
      $region52: #{tpu_custom_call.1} parent=5 // pred_fallthru
        _
    $region6: #{tpu_custom_call.1} parent=1 // loop_footer
      %s21 = sadd.s32 1, %s17
    $region7: #{tpu_custom_call.1} parent=1 // loop_footer_branch
      %16 = sbr.rel target = $region3
    $region8: #{tpu_custom_call.1} parent=1 // loop_exit
      _
    %773 = vsyncpa [#allocation3], 1
    %s774 = scalar_lea.sflag [#allocation3], 1
    %775 = vsyncpa %s774, 1
    %776 = vsyncpa [#allocation6], 1
    %777 = vsyncpa [#allocation4], 1
    %s778 = scalar_lea.sflag [#allocation4], 1
    %779 = vsyncpa %s778, 1

</llo_original>
